<compile_context>
chip_gen: v5e
topology: v5e:2x2
jax: 0.10.0
libtpu: 0.0.40
codegen_flags: <defaults>
</compile_context>

<pallas_src>
import jax
import jax.numpy as jnp
from jax.experimental import pallas as pl
from jax.experimental.pallas import tpu as pltpu

IMAGENET_MEAN = jnp.array([0.485, 0.456, 0.406], dtype=jnp.float32)
IMAGENET_STD = jnp.array([0.229, 0.224, 0.225], dtype=jnp.float32)


def _normalize_kernel(x_ref, scale_ref, bias_ref, o_ref):
    # x_ref / o_ref: (rb, hwb) tiles.  scale/bias: (rb, 1) f32, lane-broadcast.
    x = x_ref[...].astype(jnp.float32)
    o_ref[...] = (x * scale_ref[...] + bias_ref[...]).astype(o_ref.dtype)


def _vmem_budgets():
    """(per-buffer block budget bytes, vmem_limit_bytes), generation-aware."""
    try:
        vmem = int(pltpu.get_tpu_info().vmem_capacity_bytes)
    except Exception:  # interpret mode / unknown chip: assume smallest (v7x)
        vmem = 64 << 20
    if vmem >= (96 << 20):            # v5e / v6e: 128 MiB physical VMEM
        return 8 << 20, 48 << 20      # ~32 MiB pipelined in+out footprint
    else:                             # v7x: 64 MiB physical VMEM
        return 4 << 20, 32 << 20      # ~16 MiB pipelined footprint


def _pick_blocks(nc, hw, elem, sub, budget):
    """Pick (row_block, lane_block): row_block is a multiple of `sub` or the
    full dim, lane_block is a multiple of 128 or the full dim, and
    row_block * lane_block * elem <= budget.  Blocks that do not divide the
    array use a cdiv grid; Pallas masks the ragged boundary block."""

    def max_rows(hwb):
        if nc * hwb * elem <= budget:
            return nc                              # full rows always legal
        rows = (budget // (hwb * elem)) // sub * sub
        return rows if rows >= sub else 0

    # 1) Full-width rows (fully lane-dense stores) if they fit the budget.
    rb = max_rows(hw)
    if rb > 0:
        return rb, hw

    # 2) Rows too wide even at the minimum sublane block: tile the lane dim in
    #    multiples of 128 (only reachable for hw >> 128 at MiB-scale budgets).
    hwb = (budget // (sub * elem)) // 128 * 128
    hwb = max(128, min(hwb, (hw // 128) * 128))
    rb = max_rows(hwb)
    if rb == 0:                                    # safety net (unreachable)
        rb, hwb = min(nc, sub), 128
    return rb, hwb


def _ensure_two_steps(nc, hw, rb, hwb, sub):
    """If the grid collapses to a single step, split one axis so v7x's two
    TensorCores both get work.  Costs at most one extra ~0.35 us step on
    single-TC chips."""
    if pl.cdiv(nc, rb) * pl.cdiv(hw, hwb) >= 2:
        return rb, hwb
    if hw >= 256:
        half = pl.cdiv(pl.cdiv(hw, 2), 128) * 128
        if half < hw:
            return rb, half
    if nc >= 2 * sub:
        half_r = pl.cdiv(pl.cdiv(nc, 2), sub) * sub
        if half_r < nc:
            return half_r, hwb
    return rb, hwb


def imagenet_normalize(x: jax.Array) -> jax.Array:
    """(x - mean[c]) / std[c] for NCHW input with C == 3 (PyTorch ImageNetNormalize)."""
    assert x.ndim == 4 and x.shape[1] == 3, "ImageNetNormalize expects NCHW with C == 3"
    assert jnp.issubdtype(x.dtype, jnp.floating), (
        "ImageNetNormalize expects a floating-point image tensor")
    n, c, h, w = x.shape
    nc, hw = n * c, h * w
    elem = jnp.dtype(x.dtype).itemsize
    sub = max(8, 32 // elem)          # sublane multiple: 8 f32 / 16 bf16 / 32 fp8-int8

    budget, vmem_limit = _vmem_budgets()
    rb, hwb = _pick_blocks(nc, hw, elem, sub, budget)
    rb, hwb = _ensure_two_steps(nc, hw, rb, hwb, sub)
    grid = (pl.cdiv(nc, rb), pl.cdiv(hw, hwb))

    # Free (contiguous) reshape to a lane-dense 2-D view.
    x2 = x.reshape(nc, hw)

    # Fold (mean, std) into tiny per-row f32 scale/bias vectors; channel varies
    # fastest in the flattened (N*C) row order so tiling N times lines up.
    scale = jnp.tile(1.0 / IMAGENET_STD, n).reshape(nc, 1)          # float32
    bias = jnp.tile(-IMAGENET_MEAN / IMAGENET_STD, n).reshape(nc, 1)  # float32

    out2 = pl.pallas_call(
        _normalize_kernel,
        out_shape=jax.ShapeDtypeStruct((nc, hw), x.dtype),
        grid_spec=pltpu.PrefetchScalarGridSpec(
            num_scalar_prefetch=0,
            grid=grid,
            in_specs=[
                pl.BlockSpec((rb, hwb), lambda i, j: (i, j)),
                pl.BlockSpec((rb, 1), lambda i, j: (i, 0)),
                pl.BlockSpec((rb, 1), lambda i, j: (i, 0)),
            ],
            out_specs=pl.BlockSpec((rb, hwb), lambda i, j: (i, j)),
        ),
        compiler_params=pltpu.CompilerParams(
            # Every grid step is independent; lets v7x shard across its 2 TCs.
            dimension_semantics=("parallel", "parallel"),
            vmem_limit_bytes=vmem_limit,
        ),
        cost_estimate=pl.CostEstimate(
            flops=2 * nc * hw,
            transcendentals=0,
            bytes_accessed=2 * nc * hw * elem,
        ),
        # Output may reuse the input's HBM buffer; becomes a true in-place
        # update when the caller donates x at the jit boundary.
        input_output_aliases={0: 0},
    )(x2, scale, bias)

    return out2.reshape(n, c, h, w)


if __name__ == "__main__":
    def _ref(x):
        m = IMAGENET_MEAN.reshape(1, 3, 1, 1)
        s = IMAGENET_STD.reshape(1, 3, 1, 1)
        return ((x.astype(jnp.float32) - m) / s).astype(x.dtype)

    # Primary small case: batch=2, channels=3 (ImageNet), 16x16 spatial, f32.
    x = jax.random.uniform(jax.random.PRNGKey(0), (2, 3, 16, 16), dtype=jnp.float32)
    ref = _ref(x)                      # compute ref before the (aliased) call
    out = jax.block_until_ready(imagenet_normalize(x))
    assert out.shape == x.shape and out.dtype == x.dtype
    assert jnp.allclose(out, ref, atol=1e-5, rtol=1e-5)

    # Exercise the ragged lane-block path (H*W = 900 is not a multiple of 128).
    x_r = jax.random.uniform(jax.random.PRNGKey(1), (1, 3, 30, 30), dtype=jnp.float32)
    ref_r = _ref(x_r)
    out_r = jax.block_until_ready(imagenet_normalize(x_r))
    assert jnp.allclose(out_r, ref_r, atol=1e-5, rtol=1e-5)

    # Exercise the bf16 path (f32 FMA inside the kernel, cast at the store).
    x_b = jax.random.uniform(jax.random.PRNGKey(2), (2, 3, 16, 16), dtype=jnp.bfloat16)
    ref_b = _ref(x_b)
    out_b = jax.block_until_ready(imagenet_normalize(x_b))
    assert out_b.dtype == jnp.bfloat16
    assert jnp.allclose(out_b.astype(jnp.float32), ref_b.astype(jnp.float32),
                        atol=2e-2, rtol=2e-2)

    print("KERNEL_OK")
</pallas_src>

<mosaic_0001>
module attributes {stable_mosaic.version = 11 : i64} {
  func.func @_normalize_kernel(%arg0: i32, %arg1: i32, %arg2: memref<6x128xf32, #tpu.memory_space<vmem>>, %arg3: memref<6x1xf32, #tpu.memory_space<vmem>>, %arg4: memref<6x1xf32, #tpu.memory_space<vmem>>, %arg5: memref<6x128xf32, #tpu.memory_space<vmem>>) attributes {dimension_semantics = [#tpu.dimension_semantics<parallel>, #tpu.dimension_semantics<parallel>], iteration_bounds = array<i64: 1, 2>, scalar_prefetch = 0 : i64, scratch_operands = 0 : i64, tpu.core_type = #tpu.core_type<tc>, window_params = [{transform_indices = @transform_0, window_bounds = array<i64: 6, 128>}, {transform_indices = @transform_1, window_bounds = array<i64: 6, 1>}, {transform_indices = @transform_2, window_bounds = array<i64: 6, 1>}, {transform_indices = @transform_3, window_bounds = array<i64: 6, 128>}]} {
    %c0 = arith.constant 0 : index
    %c0_0 = arith.constant 0 : index
    %0 = vector.load %arg2[%c0, %c0_0] : memref<6x128xf32, #tpu.memory_space<vmem>>, vector<6x128xf32>
    %c0_1 = arith.constant 0 : index
    %c0_2 = arith.constant 0 : index
    %1 = vector.load %arg3[%c0_1, %c0_2] : memref<6x1xf32, #tpu.memory_space<vmem>>, vector<6x1xf32>
    %2 = vector.broadcast %1 : vector<6x1xf32> to vector<6x128xf32>
    %3 = arith.mulf %0, %2 : vector<6x128xf32>
    %c0_3 = arith.constant 0 : index
    %c0_4 = arith.constant 0 : index
    %4 = vector.load %arg4[%c0_3, %c0_4] : memref<6x1xf32, #tpu.memory_space<vmem>>, vector<6x1xf32>
    %5 = vector.broadcast %4 : vector<6x1xf32> to vector<6x128xf32>
    %6 = arith.addf %3, %5 : vector<6x128xf32>
    %c0_5 = arith.constant 0 : index
    %c0_6 = arith.constant 0 : index
    %7 = vector.load %arg5[%c0_5, %c0_6] : memref<6x128xf32, #tpu.memory_space<vmem>>, vector<6x128xf32>
    tpu.vector_store %arg5[%c0_5, %c0_6], %6 {strides = array<i32>} : memref<6x128xf32, #tpu.memory_space<vmem>>, vector<6x128xf32>,
    return
  }
  func.func @transform_0(%arg0: i32, %arg1: i32) -> (i32, i32) {
    %c0_i32 = arith.constant 0 : i32
    return %arg0, %arg1 : i32, i32
  }
  func.func @transform_1(%arg0: i32, %arg1: i32) -> (i32, i32) {
    %c0_i32 = arith.constant 0 : i32
    %c0_i32_0 = arith.constant 0 : i32
    return %arg0, %c0_i32 : i32, i32
  }
  func.func @transform_2(%arg0: i32, %arg1: i32) -> (i32, i32) {
    %c0_i32 = arith.constant 0 : i32
    %c0_i32_0 = arith.constant 0 : i32
    return %arg0, %c0_i32 : i32, i32
  }
  func.func @transform_3(%arg0: i32, %arg1: i32) -> (i32, i32) {
    %c0_i32 = arith.constant 0 : i32
    return %arg0, %arg1 : i32, i32
  }
}

</mosaic_0001>

<llo_original>
// kernel: tpu_custom_call.1
$region0: #{tpu_custom_call.1}
  #allocation0 [shape = 'u32[]', space=smem, size = 0x4, offset = 0x4, fixed_abs, tag = 'smem constant byte address 0x4 - core index']
  #allocation1 [shape = 'u32[72,128]{1,0:T(1,128)}', space=vmem, size = 0x9000, scoped, tag = 'internal scratch']
  %s0 = inlined_call_operand.hbm [shape: f32[6,256], index: 0, kind: input, shape index: {}, may-alias: {0,3}]
  %s1 = inlined_call_operand.vmem [shape: f32[6,1], index: 1, kind: input, shape index: {}]
  %s2 = inlined_call_operand.vmem [shape: f32[6,1], index: 2, kind: input, shape index: {}]
  %s3 = inlined_call_operand.hbm [shape: f32[6,256], index: 3, kind: output, shape index: {}, may-alias: {0,3}]
  %s4 = sld [smem:[#allocation0]]
  $region49: #{tpu_custom_call.1} parent=0
    _
  %s6 = ssub.s32 1, %s4
  %s7 = scalar_select 0, %s6, %s4
  $region1: #{tpu_custom_call.1} parent=0
    #allocation2 [shape = 'u8[8192]{0}', space=vmem, size = 0x2000, scoped, tag = 'input window, operand 0']
    #allocation3 [shape = 's32[2]{0}', space=sflag, size = 0x8, scoped, tag = 'scoped memory for tpu_custom_call.1']
    #allocation4 [shape = 's32[2]{0}', space=sflag, size = 0x8, scoped, tag = 'scoped memory for tpu_custom_call.1']
    #allocation5 [shape = 'u8[8192]{0}', space=vmem, size = 0x2000, scoped, tag = 'output window, operand 0']
    %8 = vsyncpa [#allocation3], 0
    %s9 = scalar_lea.sflag [#allocation3], 1
    %10 = vsyncpa %s9, 0
    %11 = vsyncpa [#allocation4], 0
    %s12 = scalar_lea.sflag [#allocation4], 1
    %13 = vsyncpa %s12, 0
    loop: start=0, step=1, limit=4
    $region2: #{tpu_custom_call.1} parent=1 // loop_pre_header
      _
    $region3: #{tpu_custom_call.1} parent=1 // loop_header
      %s15 = sphi 0, %s19
      %p16 = scmp.ge.s32.totalorder %s15, 4
      %s22 = sphi 0, %s34
      %s23 = sphi 0, %s30
      %s24 = sphi 0, %s22
      %s25 = sphi 0, %s23
      %s26 = sphi 0, %s24
      %s27 = sphi 0, %s25
      %s39 = sphi 0, %s41
      %s42 = sphi 0, %s39
      %s43 = sphi 0, %s42
      %s59 = sphi 0, %s43
      %s65 = sphi 0, %s67
      %s68 = sphi 0, %s65
      %s69 = sphi 0, %s68
      %s85 = sphi 0, %s69
      %s91 = sphi 0, %s93
      %s94 = sphi 0, %s91
      %s95 = sphi 0, %s94
      %s111 = sphi 0, %s95
      %s119 = sphi 0, %s121
      %s122 = sphi 0, %s119
      %s123 = sphi 0, %s122
      %s139 = sphi 0, %s123
    $region4: #{tpu_custom_call.1} parent=1 // loop_header_branch
      %18 = sbr.rel (%p16) target = $region8
    $region5: #{tpu_custom_call.1} parent=1 // loop_body
      %s20 = ssub.s32 %s15, 1
      %s21 = ssub.s32 %s15, 2
      %s28 = sadd.s32 1, %s23
      %p29 = scmp.ge.s32.totalorder %s28, 2
      %s30 = scalar_select %p29, 0, %s28
      %s31 = sadd.s32 1, %s22
      %s32 = scalar_select %p29, %s31, %s22
      %p33 = scmp.ge.s32.totalorder %s32, 1
      %s34 = scalar_select %p33, 0, %s32
      %s35 = ssub.s32 %s22, %s34
      %s36 = ssub.s32 %s23, %s30
      %s37 = sor.u32 %s35, %s36
      %p38 = scmp.eq.s32.totalorder %s37, 0
      %s40 = sadd.s32 %s39, 1
      %s41 = scalar_select %p38, %s39, %s40
      %p44 = pneg %p38
      %p45 = scmp.eq.s32.totalorder %s15, 1
      %p46 = por %p44, %p45
      %p47 = scmp.ne.s32.totalorder %s39, %s42
      %p48 = scmp.eq.s32.totalorder %s15, 0
      %p49 = por %p47, %p48
      %p50 = scmp.ne.s32.totalorder %s39, %s42
      %p51 = scmp.eq.s32.totalorder %s20, 1
      %p52 = por %p50, %p51
      %p53 = scmp.ne.s32.totalorder %s42, %s43
      %p54 = scmp.eq.s32.totalorder %s20, 0
      %p55 = por %p53, %p54
      %p56 = scmp.ne.s32.totalorder %s42, %s43
      %p57 = scmp.eq.s32.totalorder %s21, 1
      %p58 = por %p56, %p57
      %p60 = scmp.ne.s32.totalorder %s43, %s59
      %p61 = scmp.eq.s32.totalorder %s21, 0
      %p62 = por %p60, %p61
      %s63 = ssub.s32 %s22, %s34
      %p64 = scmp.eq.s32.totalorder %s63, 0
      %s66 = sadd.s32 %s65, 1
      %s67 = scalar_select %p64, %s65, %s66
      %p70 = pneg %p64
      %p71 = scmp.eq.s32.totalorder %s15, 1
      %p72 = por %p70, %p71
      %p73 = scmp.ne.s32.totalorder %s65, %s68
      %p74 = scmp.eq.s32.totalorder %s15, 0
      %p75 = por %p73, %p74
      %p76 = scmp.ne.s32.totalorder %s65, %s68
      %p77 = scmp.eq.s32.totalorder %s20, 1
      %p78 = por %p76, %p77
      %p79 = scmp.ne.s32.totalorder %s68, %s69
      %p80 = scmp.eq.s32.totalorder %s20, 0
      %p81 = por %p79, %p80
      %p82 = scmp.ne.s32.totalorder %s68, %s69
      %p83 = scmp.eq.s32.totalorder %s21, 1
      %p84 = por %p82, %p83
      %p86 = scmp.ne.s32.totalorder %s69, %s85
      %p87 = scmp.eq.s32.totalorder %s21, 0
      %p88 = por %p86, %p87
      %s89 = ssub.s32 %s22, %s34
      %p90 = scmp.eq.s32.totalorder %s89, 0
      %s92 = sadd.s32 %s91, 1
      %s93 = scalar_select %p90, %s91, %s92
      %p96 = pneg %p90
      %p97 = scmp.eq.s32.totalorder %s15, 1
      %p98 = por %p96, %p97
      %p99 = scmp.ne.s32.totalorder %s91, %s94
      %p100 = scmp.eq.s32.totalorder %s15, 0
      %p101 = por %p99, %p100
      %p102 = scmp.ne.s32.totalorder %s91, %s94
      %p103 = scmp.eq.s32.totalorder %s20, 1
      %p104 = por %p102, %p103
      %p105 = scmp.ne.s32.totalorder %s94, %s95
      %p106 = scmp.eq.s32.totalorder %s20, 0
      %p107 = por %p105, %p106
      %p108 = scmp.ne.s32.totalorder %s94, %s95
      %p109 = scmp.eq.s32.totalorder %s21, 1
      %p110 = por %p108, %p109
      %p112 = scmp.ne.s32.totalorder %s95, %s111
      %p113 = scmp.eq.s32.totalorder %s21, 0
      %p114 = por %p112, %p113
      %s115 = ssub.s32 %s22, %s34
      %s116 = ssub.s32 %s23, %s30
      %s117 = sor.u32 %s115, %s116
      %p118 = scmp.eq.s32.totalorder %s117, 0
      %s120 = sadd.s32 %s119, 1
      %s121 = scalar_select %p118, %s119, %s120
      %p124 = pneg %p118
      %p125 = scmp.eq.s32.totalorder %s15, 1
      %p126 = por %p124, %p125
      %p127 = scmp.ne.s32.totalorder %s119, %s122
      %p128 = scmp.eq.s32.totalorder %s15, 0
      %p129 = por %p127, %p128
      %p130 = scmp.ne.s32.totalorder %s119, %s122
      %p131 = scmp.eq.s32.totalorder %s20, 1
      %p132 = por %p130, %p131
      %p133 = scmp.ne.s32.totalorder %s122, %s123
      %p134 = scmp.eq.s32.totalorder %s20, 0
      %p135 = por %p133, %p134
      %p136 = scmp.ne.s32.totalorder %s122, %s123
      %p137 = scmp.eq.s32.totalorder %s21, 1
      %p138 = por %p136, %p137
      %p140 = scmp.ne.s32.totalorder %s123, %s139
      %p141 = scmp.eq.s32.totalorder %s21, 0
      %p142 = por %p140, %p141
      %p143 = scmp.le.s32.totalorder 1, %s15
      %p144 = scmp.lt.s32.totalorder %s15, 3
      %p145 = pnand %p143, %p144
      %p146 = pneg %p145
      // Predicated region
      $region9: #{tpu_custom_call.1} parent=5 // pred_check
        _
      $region10: #{tpu_custom_call.1} parent=5 // pred_check_branch
        %148 = sbr.rel (%p145) target = $region12
      $region11: #{tpu_custom_call.1} parent=5 // pred_region
        %s149 = ssub.s32 %s15, 1
        // Predicated region
        $region13: #{tpu_custom_call.1} parent=11 // pred_check
          %p150 = pneg %p81
        $region14: #{tpu_custom_call.1} parent=11 // pred_check_branch
          %152 = sbr.rel (%p150) target = $region16
        $region15: #{tpu_custom_call.1} parent=11 // pred_region
          %p153 = scmp.lt.s32.totalorder %s24, 0
          %s154 = scalar_select %p153, %s24, 0
          %s155 = smul.addr %s154, 8
          %s156 = scalar_lea.vmem %s1, %s155
        $region16: #{tpu_custom_call.1} parent=11 // pred_fallthru
          _
        // Predicated region
        $region17: #{tpu_custom_call.1} parent=11 // pred_check
          %p157 = pneg %p107
        $region18: #{tpu_custom_call.1} parent=11 // pred_check_branch
          %159 = sbr.rel (%p157) target = $region20
        $region19: #{tpu_custom_call.1} parent=11 // pred_region
          %p160 = scmp.lt.s32.totalorder %s24, 0
          %s161 = scalar_select %p160, %s24, 0
          %s162 = smul.addr %s161, 8
          %s163 = scalar_lea.vmem %s2, %s162
        $region20: #{tpu_custom_call.1} parent=11 // pred_fallthru
          _
      $region12: #{tpu_custom_call.1} parent=5 // pred_fallthru
        _
      %p164 = scmp.lt.s32.totalorder %s15, 2
      // Predicated region
      $region21: #{tpu_custom_call.1} parent=5 // pred_check
        %p165 = pneg %p164
      $region22: #{tpu_custom_call.1} parent=5 // pred_check_branch
        %167 = sbr.rel (%p165) target = $region24
      $region23: #{tpu_custom_call.1} parent=5 // pred_region
        // Predicated region
        $region25: #{tpu_custom_call.1} parent=23 // pred_check
          %p168 = pneg %p49
        $region26: #{tpu_custom_call.1} parent=23 // pred_check_branch
          %170 = sbr.rel (%p168) target = $region28
        $region27: #{tpu_custom_call.1} parent=23 // pred_region
          %s171 = sand.u32 %s39, 1
          %s172 = scalar_lea.sflag [#allocation3], %s171
          %s173 = sand.u32 %s39, 1
          %s174 = smul.addr %s173, 8
          %s175 = scalar_lea.vmem [#allocation2], %s174
          %177 = vsyncadd %s172, 0
          %s178 = smul.addr %s22, 2
          %s179 = sadd.s32 %s23, %s178
          %s180 = smul.addr %s179, 8
          %s181 = scalar_lea.hbm %s0, %s180
          %s183 = sshll.u32 %s181, 4
          %s184 = int_to_ptr.hbm [resolvable:$true] %s183
          %s185 = sshll.u32 %s175, 4
          %s186 = int_to_ptr.vmem [resolvable:$true] %s185
          %188 = dma.hbm_to_vmem [thread:$0]  %s184, 128, %s186, %s172
        $region28: #{tpu_custom_call.1} parent=23 // pred_fallthru
          _
      $region24: #{tpu_custom_call.1} parent=5 // pred_fallthru
        _
      %p189 = scmp.le.s32.totalorder 1, %s15
      %p190 = scmp.lt.s32.totalorder %s15, 3
      %p191 = pnand %p189, %p190
      %p192 = pneg %p191
      // Predicated region
      $region29: #{tpu_custom_call.1} parent=5 // pred_check
        _
      $region30: #{tpu_custom_call.1} parent=5 // pred_check_branch
        %194 = sbr.rel (%p191) target = $region32
      $region31: #{tpu_custom_call.1} parent=5 // pred_region
        %s195 = ssub.s32 %s15, 1
        %s196 = sand.u32 %s42, 1
        %s197 = scalar_lea.sflag [#allocation3], %s196
        %s198 = sand.u32 %s42, 1
        %s199 = smul.addr %s198, 8
        %s200 = scalar_lea.vmem [#allocation2], %s199
        // Predicated region
        $region33: #{tpu_custom_call.1} parent=31 // pred_check
          %p201 = pneg %p55
        $region34: #{tpu_custom_call.1} parent=31 // pred_check_branch
          %203 = sbr.rel (%p201) target = $region36
        $region35: #{tpu_custom_call.1} parent=31 // pred_region
          %205 = dma.done %s197, 128
        $region36: #{tpu_custom_call.1} parent=31 // pred_fallthru
          _
        %s206 = sand.u32 %s42, 1
        %s207 = scalar_lea.sflag [#allocation3], %s206
        %s208 = sand.u32 %s42, 1
        %s209 = smul.addr %s208, 8
        %s210 = scalar_lea.vmem [#allocation2], %s209
        %p211 = pneg %p55
        %p212 = pneg %p52
        %p213 = scmp.lt.s32.totalorder %s24, 0
        %s214 = scalar_select %p213, %s24, 0
        %s215 = smul.addr %s214, 8
        %s216 = scalar_lea.vmem %s1, %s215
        %p217 = pneg %p81
        %p218 = pneg %p78
        %p219 = scmp.lt.s32.totalorder %s24, 0
        %s220 = scalar_select %p219, %s24, 0
        %s221 = smul.addr %s220, 8
        %s222 = scalar_lea.vmem %s2, %s221
        %p223 = pneg %p107
        %p224 = pneg %p104
        %p225 = pneg %p135
        %p226 = pneg %p132
        %s227 = sand.u32 %s122, 1
        %s228 = scalar_lea.sflag [#allocation4], %s227
        %s229 = sand.u32 %s122, 1
        %s230 = smul.addr %s229, 8
        %s231 = scalar_lea.vmem [#allocation5], %s230
        %p232 = scmp.lt.s32.totalorder %s24, 0
        %s233 = scalar_select %p232, %s24, 0
        %s234 = smul.addr %s233, 8
        %s235 = scalar_lea.vmem %s1, %s234
        %p236 = scmp.lt.s32.totalorder %s24, 0
        %s237 = scalar_select %p236, %s24, 0
        %s238 = smul.addr %s237, 8
        %s239 = scalar_lea.vmem %s2, %s238
        %v240 = vld [vmem:[%s200] sm:$0x3f]
        %v241 = vld [vmem:[%s235] sm:$0x3f]
        %243 = vset.pattern.permute.xlu0 0
        %244 = vperm.xlu0 %243, %v241
        %v245 = vpop.permute.xlu0 %244
        %v247 = vmul.f32 %v240, %v245
        %v248 = vld [vmem:[%s239] sm:$0x3f]
        %250 = vset.pattern.permute.xlu0 0
        %251 = vperm.xlu0 %250, %v248
        %v252 = vpop.permute.xlu0 %251
        %v254 = vadd.f32 %v247, %v252
        %255 = vst [vmem:[%s231] sm:$0x3f] %v254
        %s256 = sand.u32 %s122, 1
        %s257 = scalar_lea.sflag [#allocation4], %s256
        %s258 = sand.u32 %s122, 1
        %s259 = smul.addr %s258, 8
        %s260 = scalar_lea.vmem [#allocation5], %s259
        // Predicated region
        $region37: #{tpu_custom_call.1} parent=31 // pred_check
          %p261 = pneg %p132
        $region38: #{tpu_custom_call.1} parent=31 // pred_check_branch
          %263 = sbr.rel (%p261) target = $region40
        $region39: #{tpu_custom_call.1} parent=31 // pred_region
          %265 = vsyncadd %s257, 0
          %s266 = smul.addr %s24, 2
          %s267 = sadd.s32 %s25, %s266
          %s268 = smul.addr %s267, 8
          %s269 = scalar_lea.hbm %s3, %s268
          %s271 = sshll.u32 %s260, 4
          %s272 = int_to_ptr.vmem [resolvable:$true] %s271
          %s273 = sshll.u32 %s269, 4
          %s274 = int_to_ptr.hbm [resolvable:$true] %s273
          %276 = dma.vmem_to_hbm [thread:$0]  %s272, 128, %s274, %s257
        $region40: #{tpu_custom_call.1} parent=31 // pred_fallthru
          _
      $region32: #{tpu_custom_call.1} parent=5 // pred_fallthru
        _
      %p277 = scmp.le.s32.totalorder 2, %s15
      // Predicated region
      $region41: #{tpu_custom_call.1} parent=5 // pred_check
        %p278 = pneg %p277
      $region42: #{tpu_custom_call.1} parent=5 // pred_check_branch
        %280 = sbr.rel (%p278) target = $region44
      $region43: #{tpu_custom_call.1} parent=5 // pred_region
        %s281 = ssub.s32 %s15, 2
        // Predicated region
        $region45: #{tpu_custom_call.1} parent=43 // pred_check
          %p282 = pneg %p138
        $region46: #{tpu_custom_call.1} parent=43 // pred_check_branch
          %284 = sbr.rel (%p282) target = $region48
        $region47: #{tpu_custom_call.1} parent=43 // pred_region
          %s285 = sand.u32 %s123, 1
          %s286 = scalar_lea.sflag [#allocation4], %s285
          %s287 = sand.u32 %s123, 1
          %s288 = smul.addr %s287, 8
          %s289 = scalar_lea.vmem [#allocation5], %s288
          %291 = dma.done %s286, 128
        $region48: #{tpu_custom_call.1} parent=43 // pred_fallthru
          _
      $region44: #{tpu_custom_call.1} parent=5 // pred_fallthru
        _
    $region6: #{tpu_custom_call.1} parent=1 // loop_footer
      %s19 = sadd.s32 1, %s15
    $region7: #{tpu_custom_call.1} parent=1 // loop_footer_branch
      %14 = sbr.rel target = $region3
    $region8: #{tpu_custom_call.1} parent=1 // loop_exit
      _
    %292 = vsyncpa [#allocation3], 1
    %s293 = scalar_lea.sflag [#allocation3], 1
    %294 = vsyncpa %s293, 1
    %295 = vsyncpa [#allocation4], 1
    %s296 = scalar_lea.sflag [#allocation4], 1
    %297 = vsyncpa %s296, 1

</llo_original>
